<compile_context>
chip_gen: v5e
topology: v5e:2x2
jax: 0.10.0
libtpu: 0.0.40
codegen_flags: <defaults>
</compile_context>

<pallas_src>
import math
from functools import partial

import jax
import jax.numpy as jnp
from jax.experimental import pallas as pl
from jax.experimental.pallas import tpu as pltpu


def _round_up(n, m):
    return ((n + m - 1) // m) * m


def _pick_tile(s, target):
    """Largest divisor of s that is a multiple of 8 and <= target, else s (single tile)."""
    for d in range(min(target, s), 7, -1):
        if s % d == 0 and d % 8 == 0:
            return d
    return s


def _self_attention_kernel(xq_ref, xkv_ref, w_ref, b_ref, out_ref, feat_ref,
                           q_sc, m_sc, l_sc, acc_sc, *,
                           dim_kp, norm_fact, compute_dtype, approx_recip):
    """Flash-style self-attention with fused QKV projection.

    Grid = (batch, q_tiles, kv_tiles); kv is the innermost reduction axis.
      xq_ref  : (1, TQ, Dp)   query-side rows of x (also the residual source)
      xkv_ref : (1, TK, Dp)   key/value-side rows of x
      w_ref   : (Dp, 2*dim_kp + dim_vp)  fused pre-transposed [Wq | Wk | Wv]
      b_ref   : (1,  2*dim_kp + dim_vp)  fused bias
      out_ref : (1, TQ, dim_vp)          atten @ V   (written on last kv step)
      feat_ref: (1, TQ, Dp)              out + x     (written on last kv step)
    """
    _, TQ, Dp = xq_ref.shape
    _, TK, _ = xkv_ref.shape
    dim_vp = out_ref.shape[-1]
    ki = pl.program_id(2)

    @pl.when(ki == 0)
    def _init():
        # Project Q for this q-tile once and cache it for the whole kv loop.
        xq = xq_ref[...].reshape(TQ, Dp).astype(compute_dtype)
        q = jax.lax.dot_general(
            xq, w_ref[:, :dim_kp],
            dimension_numbers=(((1,), (0,)), ((), ())),
            preferred_element_type=jnp.float32) + b_ref[:, :dim_kp]
        q_sc[...] = q.astype(compute_dtype)
        m_sc[...] = jnp.full((TQ, 1), -jnp.inf, jnp.float32)
        l_sc[...] = jnp.zeros((TQ, 1), jnp.float32)
        acc_sc[...] = jnp.zeros((TQ, dim_vp), jnp.float32)

    # Project K / V for this kv tile (f32 accumulation, f32 bias add).
    xkv = xkv_ref[...].reshape(TK, Dp).astype(compute_dtype)
    k = (jax.lax.dot_general(
            xkv, w_ref[:, dim_kp:2 * dim_kp],
            dimension_numbers=(((1,), (0,)), ((), ())),
            preferred_element_type=jnp.float32)
         + b_ref[:, dim_kp:2 * dim_kp]).astype(compute_dtype)
    v = (jax.lax.dot_general(
            xkv, w_ref[:, 2 * dim_kp:],
            dimension_numbers=(((1,), (0,)), ((), ())),
            preferred_element_type=jnp.float32)
         + b_ref[:, 2 * dim_kp:]).astype(compute_dtype)

    # scores = Q @ K^T : contract last dims of both, no materialized transpose.
    s = jax.lax.dot_general(
        q_sc[...], k,
        dimension_numbers=(((1,), (1,)), ((), ())),
        preferred_element_type=jnp.float32)                    # (TQ, TK) f32

    # Online-softmax update (all elementwise math in f32 — v5e safe).
    m_prev = m_sc[...]
    m_new = jnp.maximum(m_prev, jnp.max(s, axis=-1, keepdims=True))
    alpha = jnp.exp(m_prev - m_new)
    p = jnp.exp(s - m_new)
    l_sc[...] = alpha * l_sc[...] + jnp.sum(p, axis=-1, keepdims=True)
    acc_sc[...] = alpha * acc_sc[...] + jax.lax.dot_general(
        p.astype(compute_dtype), v,
        dimension_numbers=(((1,), (0,)), ((), ())),
        preferred_element_type=jnp.float32)
    m_sc[...] = m_new

    @pl.when(ki == pl.num_programs(2) - 1)
    def _finalize():
        # PyTorch module applies softmax FIRST, then * 1/sqrt(dim_k): fold the
        # norm factor into the reciprocal multiply (EUP reciprocal).
        inv_l = pl.reciprocal(l_sc[...], approx=approx_recip)
        out = acc_sc[...] * (inv_l * norm_fact)                # (TQ, dim_vp) f32
        out_ref[...] = out.reshape(1, TQ, dim_vp).astype(out_ref.dtype)
        # Residual add: re-read the x tile here (short live range, already in VMEM).
        feat = out + xq_ref[...].reshape(TQ, Dp)
        feat_ref[...] = feat.reshape(1, TQ, Dp).astype(feat_ref.dtype)


def make_fused_qkv_params(wq, bq, wk, bk, wv, bv, *, compute_dtype=jnp.bfloat16):
    """Fuse + pad + pre-transpose the q/k/v Linear params.

    Pure weight plumbing — hoist this out of the per-call path and reuse.
    Padded weight rows / bias entries are exactly zero, so padded Q/K/V lanes
    are zero and cannot leak into QK^T or the outputs (keep this invariant).
    """
    dim_k, D = wq.shape
    dim_v = wv.shape[0]
    Dp = _round_up(D, 128)
    dim_kp = _round_up(dim_k, 128)
    dim_vp = _round_up(dim_v, 128)

    pad_w = lambda w, no, ni: jnp.pad(w, ((0, no - w.shape[0]), (0, ni - w.shape[1])))
    pad_b = lambda b, no: jnp.pad(b, ((0, no - b.shape[0]),))

    w_qkv = jnp.concatenate(
        [pad_w(wq, dim_kp, Dp), pad_w(wk, dim_kp, Dp), pad_w(wv, dim_vp, Dp)],
        axis=0).T.astype(compute_dtype)                       # (Dp, 2*dim_kp+dim_vp)
    b_qkv = jnp.concatenate(
        [pad_b(bq, dim_kp), pad_b(bk, dim_kp), pad_b(bv, dim_vp)]
    ).reshape(1, -1).astype(jnp.float32)
    meta = dict(input_dim=D, dim_k=dim_k, dim_v=dim_v,
                Dp=Dp, dim_kp=dim_kp, dim_vp=dim_vp, compute_dtype=compute_dtype)
    return w_qkv, b_qkv, meta


def self_attention_fused(x, w_qkv, b_qkv, meta, *, q_tile=256, kv_tile=512):
    """x: (B, S, D). Returns (output, feature=output+x), matching the module."""
    B, S, D = x.shape
    assert D == meta["input_dim"]
    dim_k, dim_v = meta["dim_k"], meta["dim_v"]
    assert dim_v == D, "residual add requires dim_v == input_dim"
    Dp, dim_kp, dim_vp = meta["Dp"], meta["dim_kp"], meta["dim_vp"]
    compute_dtype = meta["compute_dtype"]
    norm_fact = 1.0 / math.sqrt(dim_k)   # uses the UNPADDED dim_k

    # Lane padding only when needed (avoids an extra HBM pass over x).
    xp = x if D == Dp else jnp.pad(x, ((0, 0), (0, 0), (0, Dp - D)))

    # Per-batch grid + q/kv tiles (kv = reduction axis, last).
    TQ = _pick_tile(S, q_tile)
    TK = _pick_tile(S, kv_tile)
    num_q, num_kv = S // TQ, S // TK
    n_out = 2 * dim_kp + dim_vp

    # Explicit scoped-VMEM budget: double-buffered blocks + scratch + live temps.
    xsz = jnp.dtype(x.dtype).itemsize
    csz = jnp.dtype(compute_dtype).itemsize
    est = (2 * TQ * Dp * xsz                 # xq blocks
           + 2 * TK * Dp * xsz               # xkv blocks
           + 2 * Dp * n_out * csz            # fused weight
           + 2 * TQ * dim_vp * xsz           # out blocks
           + 2 * TQ * Dp * xsz               # feat blocks
           + TQ * dim_kp * csz               # Q scratch
           + TQ * dim_vp * 4 + 2 * TQ * 128 * 4   # acc, m, l scratch
           + 3 * TQ * TK * 4                 # s / p temporaries
           + 2 * TK * max(dim_kp, dim_vp) * 4)    # k, v temporaries
    vmem_limit = int(min(max(4 * est, 16 * 1024 * 1024), 64 * 1024 * 1024))

    kernel = partial(_self_attention_kernel,
                     dim_kp=dim_kp, norm_fact=norm_fact,
                     compute_dtype=compute_dtype,
                     approx_recip=(compute_dtype != jnp.float32))

    out_p, feat_p = pl.pallas_call(
        kernel,
        out_shape=(
            jax.ShapeDtypeStruct((B, S, dim_vp), x.dtype),
            jax.ShapeDtypeStruct((B, S, Dp), x.dtype),
        ),
        grid_spec=pltpu.PrefetchScalarGridSpec(
            num_scalar_prefetch=0,
            grid=(B, num_q, num_kv),
            in_specs=[
                pl.BlockSpec((1, TQ, Dp), lambda b, qi, ki: (b, qi, 0)),   # x (q rows)
                pl.BlockSpec((1, TK, Dp), lambda b, qi, ki: (b, ki, 0)),   # x (kv rows)
                pl.BlockSpec((Dp, n_out), lambda b, qi, ki: (0, 0)),       # fused W^T
                pl.BlockSpec((1, n_out), lambda b, qi, ki: (0, 0)),        # fused bias
            ],
            out_specs=[
                pl.BlockSpec((1, TQ, dim_vp), lambda b, qi, ki: (b, qi, 0)),
                pl.BlockSpec((1, TQ, Dp), lambda b, qi, ki: (b, qi, 0)),
            ],
            scratch_shapes=[
                pltpu.VMEM((TQ, dim_kp), compute_dtype),   # cached Q tile
                pltpu.VMEM((TQ, 1), jnp.float32),          # running max m
                pltpu.VMEM((TQ, 1), jnp.float32),          # running sum l
                pltpu.VMEM((TQ, dim_vp), jnp.float32),     # output accumulator
            ],
        ),
        compiler_params=pltpu.CompilerParams(
            dimension_semantics=("parallel", "parallel", "arbitrary"),
            vmem_limit_bytes=vmem_limit),
    )(xp, xp, w_qkv, b_qkv)

    out = out_p if dim_vp == dim_v else out_p[:, :, :dim_v]
    feat = feat_p if Dp == D else feat_p[:, :, :D]
    return out, feat


def self_attention(x, wq, bq, wk, bk, wv, bv, *, compute_dtype=jnp.bfloat16,
                   q_tile=256, kv_tile=512):
    """Convenience wrapper; for repeated calls hoist make_fused_qkv_params()."""
    w_qkv, b_qkv, meta = make_fused_qkv_params(
        wq, bq, wk, bk, wv, bv, compute_dtype=compute_dtype)
    return self_attention_fused(x, w_qkv, b_qkv, meta,
                                q_tile=q_tile, kv_tile=kv_tile)


def _reference(x, wq, bq, wk, bk, wv, bv):
    dim_k = wq.shape[0]
    Q = jnp.einsum("bsd,kd->bsk", x, wq) + bq
    K = jnp.einsum("bsd,kd->bsk", x, wk) + bk
    V = jnp.einsum("bsd,vd->bsv", x, wv) + bv
    scores = jnp.einsum("bik,bjk->bij", Q, K)
    atten = jax.nn.softmax(scores, axis=-1) * (1.0 / math.sqrt(dim_k))
    out = jnp.einsum("bij,bjv->biv", atten, V)
    return out, out + x


if __name__ == "__main__":
    B, S, input_dim = 2, 8, 32
    dim_k, dim_v = 32, 32  # dim_v == input_dim so the residual add is valid

    key = jax.random.PRNGKey(0)
    kx, kwq, kbq, kwk, kbk, kwv, kbv, kx2 = jax.random.split(key, 8)

    x = jax.random.normal(kx, (B, S, input_dim), dtype=jnp.float32)

    # nn.Linear-style params (out, in), PyTorch default uniform bound.
    bound = 1.0 / math.sqrt(input_dim)
    wq = jax.random.uniform(kwq, (dim_k, input_dim), jnp.float32, -bound, bound)
    bq = jax.random.uniform(kbq, (dim_k,), jnp.float32, -bound, bound)
    wk = jax.random.uniform(kwk, (dim_k, input_dim), jnp.float32, -bound, bound)
    bk = jax.random.uniform(kbk, (dim_k,), jnp.float32, -bound, bound)
    wv = jax.random.uniform(kwv, (dim_v, input_dim), jnp.float32, -bound, bound)
    bv = jax.random.uniform(kbv, (dim_v,), jnp.float32, -bound, bound)

    ref_out, ref_feat = _reference(x, wq, bq, wk, bk, wv, bv)

    # 1) Exact-precision path (f32 MXU operands): tight check vs reference.
    out32, feat32 = self_attention(x, wq, bq, wk, bk, wv, bv,
                                   compute_dtype=jnp.float32)
    jax.block_until_ready((out32, feat32))
    assert jnp.allclose(out32, ref_out, atol=1e-5, rtol=1e-5)
    assert jnp.allclose(feat32, ref_feat, atol=1e-5, rtol=1e-5)

    # 2) Fast path (bf16 MXU operands, f32 accumulation / f32 softmax math).
    out_bf, feat_bf = self_attention(x, wq, bq, wk, bk, wv, bv,
                                     compute_dtype=jnp.bfloat16)
    jax.block_until_ready((out_bf, feat_bf))
    assert jnp.allclose(out_bf, ref_out, atol=5e-2, rtol=5e-2)
    assert jnp.allclose(feat_bf, ref_feat, atol=5e-2, rtol=5e-2)

    # 3) Multi-tile flash path (several q tiles x several kv tiles), f32 exact.
    S2 = 32
    x2 = jax.random.normal(kx2, (B, S2, input_dim), dtype=jnp.float32)
    ref_out2, ref_feat2 = _reference(x2, wq, bq, wk, bk, wv, bv)
    out2, feat2 = self_attention(x2, wq, bq, wk, bk, wv, bv,
                                 compute_dtype=jnp.float32, q_tile=8, kv_tile=16)
    jax.block_until_ready((out2, feat2))
    assert jnp.allclose(out2, ref_out2, atol=1e-4, rtol=1e-4)
    assert jnp.allclose(feat2, ref_feat2, atol=1e-4, rtol=1e-4)

    print("KERNEL_OK")
</pallas_src>

<mosaic_0001>
module attributes {stable_mosaic.version = 11 : i64} {
  func.func @_self_attention_kernel(%arg0: i32, %arg1: i32, %arg2: i32, %arg3: memref<1x8x128xf32, #tpu.memory_space<vmem>>, %arg4: memref<1x8x128xf32, #tpu.memory_space<vmem>>, %arg5: memref<128x384xf32, #tpu.memory_space<vmem>>, %arg6: memref<1x384xf32, #tpu.memory_space<vmem>>, %arg7: memref<1x8x128xf32, #tpu.memory_space<vmem>>, %arg8: memref<1x8x128xf32, #tpu.memory_space<vmem>>, %arg9: memref<8x128xf32, #tpu.memory_space<vmem>>, %arg10: memref<8x1xf32, #tpu.memory_space<vmem>>, %arg11: memref<8x1xf32, #tpu.memory_space<vmem>>, %arg12: memref<8x128xf32, #tpu.memory_space<vmem>>) attributes {dimension_semantics = [#tpu.dimension_semantics<parallel>, #tpu.dimension_semantics<parallel>, #tpu.dimension_semantics<arbitrary>], iteration_bounds = array<i64: 2, 1, 1>, scalar_prefetch = 0 : i64, scratch_operands = 4 : i64, tpu.core_type = #tpu.core_type<tc>, window_params = [{transform_indices = @transform_0, window_bounds = array<i64: 1, 8, 128>}, {transform_indices = @transform_1, window_bounds = array<i64: 1, 8, 128>}, {pipeline_mode = #tpu.pipeline_mode<synchronous>, transform_indices = @transform_2, window_bounds = array<i64: 128, 384>}, {pipeline_mode = #tpu.pipeline_mode<synchronous>, transform_indices = @transform_3, window_bounds = array<i64: 1, 384>}, {transform_indices = @transform_4, window_bounds = array<i64: 1, 8, 128>}, {transform_indices = @transform_5, window_bounds = array<i64: 1, 8, 128>}]} {
    %c0_i32 = arith.constant 0 : i32
    %0 = arith.cmpi eq, %arg2, %c0_i32 : i32
    %1 = arith.extui %0 : i1 to i32
    %c0_i32_0 = arith.constant 0 : i32
    %2 = arith.cmpi ne, %1, %c0_i32_0 : i32
    scf.if %2 {
      %c0_30 = arith.constant 0 : index
      %c0_31 = arith.constant 0 : index
      %c0_32 = arith.constant 0 : index
      %42 = vector.load %arg3[%c0_30, %c0_31, %c0_32] : memref<1x8x128xf32, #tpu.memory_space<vmem>>, vector<1x8x128xf32>
      %43 = vector.shape_cast %42 : vector<1x8x128xf32> to vector<8x128xf32>
      %c0_33 = arith.constant 0 : index
      %c0_34 = arith.constant 0 : index
      %44 = vector.load %arg5[%c0_33, %c0_34] : memref<128x384xf32, #tpu.memory_space<vmem>>, vector<128x128xf32>
      %cst_35 = arith.constant dense<0.000000e+00> : vector<8x128xf32>
      %45 = tpu.matmul %43, %44, %cst_35 {dimension_numbers = #tpu.dot_dimension_numbers<[1], [0], [0], [1], [0, 0, 1, 1], [], []>} : vector<8x128xf32>, vector<128x128xf32>, vector<8x128xf32> -> vector<8x128xf32>
      %c0_36 = arith.constant 0 : index
      %c0_37 = arith.constant 0 : index
      %46 = vector.load %arg6[%c0_36, %c0_37] : memref<1x384xf32, #tpu.memory_space<vmem>>, vector<1x128xf32>
      %47 = vector.broadcast %46 : vector<1x128xf32> to vector<8x128xf32>
      %48 = arith.addf %45, %47 : vector<8x128xf32>
      %c0_38 = arith.constant 0 : index
      %c0_39 = arith.constant 0 : index
      %49 = vector.load %arg9[%c0_38, %c0_39] : memref<8x128xf32, #tpu.memory_space<vmem>>, vector<8x128xf32>
      tpu.vector_store %arg9[%c0_38, %c0_39], %48 {strides = array<i32>} : memref<8x128xf32, #tpu.memory_space<vmem>>, vector<8x128xf32>,
      %cst_40 = arith.constant 0xFF800000 : f32
      %50 = vector.broadcast %cst_40 : f32 to vector<8x1xf32>
      %c0_41 = arith.constant 0 : index
      %c0_42 = arith.constant 0 : index
      %51 = vector.load %arg10[%c0_41, %c0_42] : memref<8x1xf32, #tpu.memory_space<vmem>>, vector<8x1xf32>
      tpu.vector_store %arg10[%c0_41, %c0_42], %50 {strides = array<i32>} : memref<8x1xf32, #tpu.memory_space<vmem>>, vector<8x1xf32>,
      %cst_43 = arith.constant 0.000000e+00 : f32
      %52 = vector.broadcast %cst_43 : f32 to vector<8x1xf32>
      %c0_44 = arith.constant 0 : index
      %c0_45 = arith.constant 0 : index
      %53 = vector.load %arg11[%c0_44, %c0_45] : memref<8x1xf32, #tpu.memory_space<vmem>>, vector<8x1xf32>
      tpu.vector_store %arg11[%c0_44, %c0_45], %52 {strides = array<i32>} : memref<8x1xf32, #tpu.memory_space<vmem>>, vector<8x1xf32>,
      %cst_46 = arith.constant 0.000000e+00 : f32
      %54 = vector.broadcast %cst_46 : f32 to vector<8x128xf32>
      %c0_47 = arith.constant 0 : index
      %c0_48 = arith.constant 0 : index
      %55 = vector.load %arg12[%c0_47, %c0_48] : memref<8x128xf32, #tpu.memory_space<vmem>>, vector<8x128xf32>
      tpu.vector_store %arg12[%c0_47, %c0_48], %54 {strides = array<i32>} : memref<8x128xf32, #tpu.memory_space<vmem>>, vector<8x128xf32>,
    } else {
    }
    %c0 = arith.constant 0 : index
    %c0_1 = arith.constant 0 : index
    %c0_2 = arith.constant 0 : index
    %3 = vector.load %arg4[%c0, %c0_1, %c0_2] : memref<1x8x128xf32, #tpu.memory_space<vmem>>, vector<1x8x128xf32>
    %4 = vector.shape_cast %3 : vector<1x8x128xf32> to vector<8x128xf32>
    %c0_3 = arith.constant 0 : index
    %c128 = arith.constant 128 : index
    %5 = vector.load %arg5[%c0_3, %c128] : memref<128x384xf32, #tpu.memory_space<vmem>>, vector<128x128xf32>
    %cst = arith.constant dense<0.000000e+00> : vector<8x128xf32>
    %6 = tpu.matmul %4, %5, %cst {dimension_numbers = #tpu.dot_dimension_numbers<[1], [0], [0], [1], [0, 0, 1, 1], [], []>} : vector<8x128xf32>, vector<128x128xf32>, vector<8x128xf32> -> vector<8x128xf32>
    %c0_4 = arith.constant 0 : index
    %c128_5 = arith.constant 128 : index
    %7 = vector.load %arg6[%c0_4, %c128_5] : memref<1x384xf32, #tpu.memory_space<vmem>>, vector<1x128xf32>
    %8 = vector.broadcast %7 : vector<1x128xf32> to vector<8x128xf32>
    %9 = arith.addf %6, %8 : vector<8x128xf32>
    %c0_6 = arith.constant 0 : index
    %c256 = arith.constant 256 : index
    %10 = vector.load %arg5[%c0_6, %c256] : memref<128x384xf32, #tpu.memory_space<vmem>>, vector<128x128xf32>
    %cst_7 = arith.constant dense<0.000000e+00> : vector<8x128xf32>
    %11 = tpu.matmul %4, %10, %cst_7 {dimension_numbers = #tpu.dot_dimension_numbers<[1], [0], [0], [1], [0, 0, 1, 1], [], []>} : vector<8x128xf32>, vector<128x128xf32>, vector<8x128xf32> -> vector<8x128xf32>
    %c0_8 = arith.constant 0 : index
    %c256_9 = arith.constant 256 : index
    %12 = vector.load %arg6[%c0_8, %c256_9] : memref<1x384xf32, #tpu.memory_space<vmem>>, vector<1x128xf32>
    %13 = vector.broadcast %12 : vector<1x128xf32> to vector<8x128xf32>
    %14 = arith.addf %11, %13 : vector<8x128xf32>
    %c0_10 = arith.constant 0 : index
    %c0_11 = arith.constant 0 : index
    %15 = vector.load %arg9[%c0_10, %c0_11] : memref<8x128xf32, #tpu.memory_space<vmem>>, vector<8x128xf32>
    %cst_12 = arith.constant dense<0.000000e+00> : vector<8x8xf32>
    %16 = tpu.matmul %15, %9, %cst_12 {dimension_numbers = #tpu.dot_dimension_numbers<[1], [1], [0], [0], [0, 0, 1, 0], [], []>} : vector<8x128xf32>, vector<8x128xf32>, vector<8x8xf32> -> vector<8x8xf32>
    %c0_13 = arith.constant 0 : index
    %c0_14 = arith.constant 0 : index
    %17 = vector.load %arg10[%c0_13, %c0_14] : memref<8x1xf32, #tpu.memory_space<vmem>>, vector<8x1xf32>
    %cst_15 = arith.constant dense<0xFF800000> : vector<8xf32>
    %18 = vector.multi_reduction <maximumf>, %16, %cst_15 [1] : vector<8x8xf32> to vector<8xf32>
    %19 = vector.shape_cast %18 : vector<8xf32> to vector<8x1xf32>
    %20 = arith.maximumf %17, %19 : vector<8x1xf32>
    %21 = arith.subf %17, %20 : vector<8x1xf32>
    %22 = math.exp %21 : vector<8x1xf32>
    %23 = vector.broadcast %20 : vector<8x1xf32> to vector<8x8xf32>
    %24 = arith.subf %16, %23 : vector<8x8xf32>
    %25 = math.exp %24 : vector<8x8xf32>
    %c0_16 = arith.constant 0 : index
    %c0_17 = arith.constant 0 : index
    %26 = vector.load %arg11[%c0_16, %c0_17] : memref<8x1xf32, #tpu.memory_space<vmem>>, vector<8x1xf32>
    %27 = arith.mulf %22, %26 : vector<8x1xf32>
    %cst_18 = arith.constant dense<0.000000e+00> : vector<8xf32>
    %28 = vector.multi_reduction <add>, %25, %cst_18 [1] : vector<8x8xf32> to vector<8xf32>
    %29 = vector.shape_cast %28 : vector<8xf32> to vector<8x1xf32>
    %30 = arith.addf %27, %29 : vector<8x1xf32>
    %c0_19 = arith.constant 0 : index
    %c0_20 = arith.constant 0 : index
    %31 = vector.load %arg11[%c0_19, %c0_20] : memref<8x1xf32, #tpu.memory_space<vmem>>, vector<8x1xf32>
    tpu.vector_store %arg11[%c0_19, %c0_20], %30 {strides = array<i32>} : memref<8x1xf32, #tpu.memory_space<vmem>>, vector<8x1xf32>,
    %c0_21 = arith.constant 0 : index
    %c0_22 = arith.constant 0 : index
    %32 = vector.load %arg12[%c0_21, %c0_22] : memref<8x128xf32, #tpu.memory_space<vmem>>, vector<8x128xf32>
    %33 = vector.broadcast %22 : vector<8x1xf32> to vector<8x128xf32>
    %34 = arith.mulf %33, %32 : vector<8x128xf32>
    %cst_23 = arith.constant dense<0.000000e+00> : vector<8x128xf32>
    %35 = tpu.matmul %25, %14, %cst_23 {dimension_numbers = #tpu.dot_dimension_numbers<[1], [0], [0], [1], [0, 0, 1, 1], [], []>} : vector<8x8xf32>, vector<8x128xf32>, vector<8x128xf32> -> vector<8x128xf32>
    %36 = arith.addf %34, %35 : vector<8x128xf32>
    %c0_24 = arith.constant 0 : index
    %c0_25 = arith.constant 0 : index
    %37 = vector.load %arg12[%c0_24, %c0_25] : memref<8x128xf32, #tpu.memory_space<vmem>>, vector<8x128xf32>
    tpu.vector_store %arg12[%c0_24, %c0_25], %36 {strides = array<i32>} : memref<8x128xf32, #tpu.memory_space<vmem>>, vector<8x128xf32>,
    %c0_26 = arith.constant 0 : index
    %c0_27 = arith.constant 0 : index
    %38 = vector.load %arg10[%c0_26, %c0_27] : memref<8x1xf32, #tpu.memory_space<vmem>>, vector<8x1xf32>
    tpu.vector_store %arg10[%c0_26, %c0_27], %20 {strides = array<i32>} : memref<8x1xf32, #tpu.memory_space<vmem>>, vector<8x1xf32>,
    %c0_i32_28 = arith.constant 0 : i32
    %39 = arith.cmpi eq, %arg2, %c0_i32_28 : i32
    %40 = arith.extui %39 : i1 to i32
    %c0_i32_29 = arith.constant 0 : i32
    %41 = arith.cmpi ne, %40, %c0_i32_29 : i32
    scf.if %41 {
      %c0_30 = arith.constant 0 : index
      %c0_31 = arith.constant 0 : index
      %42 = vector.load %arg11[%c0_30, %c0_31] : memref<8x1xf32, #tpu.memory_space<vmem>>, vector<8x1xf32>
      %43 = tpu.reciprocal %42 : vector<8x1xf32> -> vector<8x1xf32>
      %c0_32 = arith.constant 0 : index
      %c0_33 = arith.constant 0 : index
      %44 = vector.load %arg12[%c0_32, %c0_33] : memref<8x128xf32, #tpu.memory_space<vmem>>, vector<8x128xf32>
      %cst_34 = arith.constant 0.176776692 : f32
      %45 = vector.broadcast %cst_34 : f32 to vector<8x1xf32>
      %46 = arith.mulf %43, %45 : vector<8x1xf32>
      %47 = vector.broadcast %46 : vector<8x1xf32> to vector<8x128xf32>
      %48 = arith.mulf %44, %47 : vector<8x128xf32>
      %49 = vector.shape_cast %48 : vector<8x128xf32> to vector<1x8x128xf32>
      %c0_35 = arith.constant 0 : index
      %c0_36 = arith.constant 0 : index
      %c0_37 = arith.constant 0 : index
      %50 = vector.load %arg7[%c0_35, %c0_36, %c0_37] : memref<1x8x128xf32, #tpu.memory_space<vmem>>, vector<1x8x128xf32>
      tpu.vector_store %arg7[%c0_35, %c0_36, %c0_37], %49 {strides = array<i32>} : memref<1x8x128xf32, #tpu.memory_space<vmem>>, vector<1x8x128xf32>,
      %c0_38 = arith.constant 0 : index
      %c0_39 = arith.constant 0 : index
      %c0_40 = arith.constant 0 : index
      %51 = vector.load %arg3[%c0_38, %c0_39, %c0_40] : memref<1x8x128xf32, #tpu.memory_space<vmem>>, vector<1x8x128xf32>
      %52 = vector.shape_cast %51 : vector<1x8x128xf32> to vector<8x128xf32>
      %53 = arith.addf %48, %52 : vector<8x128xf32>
      %54 = vector.shape_cast %53 : vector<8x128xf32> to vector<1x8x128xf32>
      %c0_41 = arith.constant 0 : index
      %c0_42 = arith.constant 0 : index
      %c0_43 = arith.constant 0 : index
      %55 = vector.load %arg8[%c0_41, %c0_42, %c0_43] : memref<1x8x128xf32, #tpu.memory_space<vmem>>, vector<1x8x128xf32>
      tpu.vector_store %arg8[%c0_41, %c0_42, %c0_43], %54 {strides = array<i32>} : memref<1x8x128xf32, #tpu.memory_space<vmem>>, vector<1x8x128xf32>,
    } else {
    }
    return
  }
  func.func @transform_0(%arg0: i32, %arg1: i32, %arg2: i32) -> (i32, i32, i32) {
    %c0_i32 = arith.constant 0 : i32
    %c0_i32_0 = arith.constant 0 : i32
    return %arg0, %arg1, %c0_i32 : i32, i32, i32
  }
  func.func @transform_1(%arg0: i32, %arg1: i32, %arg2: i32) -> (i32, i32, i32) {
    %c0_i32 = arith.constant 0 : i32
    %c0_i32_0 = arith.constant 0 : i32
    return %arg0, %arg2, %c0_i32 : i32, i32, i32
  }
  func.func @transform_2(%arg0: i32, %arg1: i32, %arg2: i32) -> (i32, i32) {
    %c0_i32 = arith.constant 0 : i32
    %c0_i32_0 = arith.constant 0 : i32
    %c0_i32_1 = arith.constant 0 : i32
    return %c0_i32, %c0_i32_0 : i32, i32
  }
  func.func @transform_3(%arg0: i32, %arg1: i32, %arg2: i32) -> (i32, i32) {
    %c0_i32 = arith.constant 0 : i32
    %c0_i32_0 = arith.constant 0 : i32
    %c0_i32_1 = arith.constant 0 : i32
    return %c0_i32, %c0_i32_0 : i32, i32
  }
  func.func @transform_4(%arg0: i32, %arg1: i32, %arg2: i32) -> (i32, i32, i32) {
    %c0_i32 = arith.constant 0 : i32
    %c0_i32_0 = arith.constant 0 : i32
    return %arg0, %arg1, %c0_i32 : i32, i32, i32
  }
  func.func @transform_5(%arg0: i32, %arg1: i32, %arg2: i32) -> (i32, i32, i32) {
    %c0_i32 = arith.constant 0 : i32
    %c0_i32_0 = arith.constant 0 : i32
    return %arg0, %arg1, %c0_i32 : i32, i32, i32
  }
}

</mosaic_0001>

<llo_original>
// kernel: tpu_custom_call.1
$region0: #{tpu_custom_call.1}
  #allocation0 [shape = 'u32[]', space=smem, size = 0x4, offset = 0x4, fixed_abs, tag = 'smem constant byte address 0x4 - core index']
  #allocation1 [shape = 'u32[72,128]{1,0:T(1,128)}', space=vmem, size = 0x9000, scoped, tag = 'internal scratch']
  #allocation2 [shape = 'f32[8,128]{1,0:T(8,128)}', space=vmem, size = 0x1000, scoped, tag = 'scratch operand']
  #allocation3 [shape = 'f32[8,1]{1,0:T(8,128)}', space=vmem, size = 0x1000, scoped, tag = 'scratch operand']
  #allocation4 [shape = 'f32[8,1]{1,0:T(8,128)}', space=vmem, size = 0x1000, scoped, tag = 'scratch operand']
  #allocation5 [shape = 'f32[8,128]{1,0:T(8,128)}', space=vmem, size = 0x1000, scoped, tag = 'scratch operand']
  %s0 = inlined_call_operand.hbm [shape: f32[2,8,128], index: 0, kind: input, shape index: {}]
  %s1 = inlined_call_operand.hbm [shape: f32[2,8,128], index: 1, kind: input, shape index: {}]
  %s2 = inlined_call_operand.hbm [shape: f32[128,384], index: 2, kind: input, shape index: {}]
  %s3 = inlined_call_operand.hbm [shape: f32[1,384], index: 3, kind: input, shape index: {}]
  %s4 = inlined_call_operand.hbm [shape: f32[2,8,128], index: 4, kind: output, shape index: {0}]
  %s5 = inlined_call_operand.hbm [shape: f32[2,8,128], index: 5, kind: output, shape index: {1}]
  %6 = xla_tuple %s4, %s5
  %s7 = sld [smem:[#allocation0]]
  $region81: #{tpu_custom_call.1} parent=0
    _
  %s9 = ssub.s32 1, %s7
  %s10 = scalar_select 0, %s9, %s7
  $region1: #{tpu_custom_call.1} parent=0
    #allocation6 [shape = 'u8[8192]{0}', space=vmem, size = 0x2000, scoped, tag = 'input window, operand 0']
    #allocation7 [shape = 's32[2]{0}', space=sflag, size = 0x8, scoped, tag = 'scoped memory for tpu_custom_call.1']
    #allocation8 [shape = 's32[2]{0}', space=sflag, size = 0x8, scoped, tag = 'scoped memory for tpu_custom_call.1']
    #allocation9 [shape = 'u8[8192]{0}', space=vmem, size = 0x2000, scoped, tag = 'input window, operand 1']
    #allocation10 [shape = 's32[2]{0}', space=sflag, size = 0x8, scoped, tag = 'scoped memory for tpu_custom_call.1']
    #allocation11 [shape = 'u8[196608]{0}', space=vmem, size = 0x30000, scoped, tag = 'input window, operand 2, single buffered']
    #allocation12 [shape = 'u8[1536]{0}', space=vmem, size = 0x800, scoped, tag = 'input window, operand 3, single buffered']
    #allocation13 [shape = 's32[1]{0}', space=sflag, size = 0x4, scoped, tag = 'scoped memory for tpu_custom_call.1']
    #allocation14 [shape = 'u8[8192]{0}', space=vmem, size = 0x2000, scoped, tag = 'output window, operand 0']
    #allocation15 [shape = 'u8[8192]{0}', space=vmem, size = 0x2000, scoped, tag = 'output window, operand 1']
    #allocation16 [shape = 's32[2]{0}', space=sflag, size = 0x8, scoped, tag = 'scoped memory for tpu_custom_call.1']
    %11 = vsyncpa [#allocation7], 0
    %s12 = scalar_lea.sflag [#allocation7], 1
    %13 = vsyncpa %s12, 0
    %14 = vsyncpa [#allocation10], 0
    %s15 = scalar_lea.sflag [#allocation10], 1
    %16 = vsyncpa %s15, 0
    %17 = vsyncpa [#allocation13], 0
    %18 = vsyncpa [#allocation8], 0
    %s19 = scalar_lea.sflag [#allocation8], 1
    %20 = vsyncpa %s19, 0
    %21 = vsyncpa [#allocation16], 0
    %s22 = scalar_lea.sflag [#allocation16], 1
    %23 = vsyncpa %s22, 0
    loop: start=0, step=1, limit=4
    $region2: #{tpu_custom_call.1} parent=1 // loop_pre_header
      _
    $region3: #{tpu_custom_call.1} parent=1 // loop_header
      %s25 = sphi 0, %s29
      %p26 = scmp.ge.s32.totalorder %s25, 4
      %s32 = sphi 0, %s51
      %s33 = sphi 0, %s47
      %s34 = sphi 0, %s43
      %s35 = sphi 0, %s32
      %s36 = sphi 0, %s33
      %s37 = sphi 0, %s34
      %s38 = sphi 0, %s35
      %s39 = sphi 0, %s36
      %s40 = sphi 0, %s37
      %s56 = sphi 0, %s58
      %s59 = sphi 0, %s56
      %s60 = sphi 0, %s59
      %s76 = sphi 0, %s60
      %s84 = sphi 0, %s86
      %s87 = sphi 0, %s84
      %s88 = sphi 0, %s87
      %s104 = sphi 0, %s88
      %s108 = sphi 0, %s108
      %s110 = sphi 0, %s108
      %s111 = sphi 0, %s110
      %s125 = sphi 0, %s111
      %s129 = sphi 0, %s129
      %s131 = sphi 0, %s129
      %s132 = sphi 0, %s131
      %s146 = sphi 0, %s132
      %s154 = sphi 0, %s156
      %s157 = sphi 0, %s154
      %s158 = sphi 0, %s157
      %s174 = sphi 0, %s158
      %s182 = sphi 0, %s184
      %s185 = sphi 0, %s182
      %s186 = sphi 0, %s185
      %s202 = sphi 0, %s186
    $region4: #{tpu_custom_call.1} parent=1 // loop_header_branch
      %28 = sbr.rel (%p26) target = $region8
    $region5: #{tpu_custom_call.1} parent=1 // loop_body
      %s30 = ssub.s32 %s25, 1
      %s31 = ssub.s32 %s25, 2
      %s41 = sadd.s32 1, %s34
      %p42 = scmp.ge.s32.totalorder %s41, 1
      %s43 = scalar_select %p42, 0, %s41
      %s44 = sadd.s32 1, %s33
      %s45 = scalar_select %p42, %s44, %s33
      %p46 = scmp.ge.s32.totalorder %s45, 1
      %s47 = scalar_select %p46, 0, %s45
      %s48 = sadd.s32 1, %s32
      %s49 = scalar_select %p46, %s48, %s32
      %p50 = scmp.ge.s32.totalorder %s49, 2
      %s51 = scalar_select %p50, 0, %s49
      %s52 = ssub.s32 %s32, %s51
      %s53 = ssub.s32 %s33, %s47
      %s54 = sor.u32 %s52, %s53
      %p55 = scmp.eq.s32.totalorder %s54, 0
      %s57 = sadd.s32 %s56, 1
      %s58 = scalar_select %p55, %s56, %s57
      %p61 = pneg %p55
      %p62 = scmp.eq.s32.totalorder %s25, 1
      %p63 = por %p61, %p62
      %p64 = scmp.ne.s32.totalorder %s56, %s59
      %p65 = scmp.eq.s32.totalorder %s25, 0
      %p66 = por %p64, %p65
      %p67 = scmp.ne.s32.totalorder %s56, %s59
      %p68 = scmp.eq.s32.totalorder %s30, 1
      %p69 = por %p67, %p68
      %p70 = scmp.ne.s32.totalorder %s59, %s60
      %p71 = scmp.eq.s32.totalorder %s30, 0
      %p72 = por %p70, %p71
      %p73 = scmp.ne.s32.totalorder %s59, %s60
      %p74 = scmp.eq.s32.totalorder %s31, 1
      %p75 = por %p73, %p74
      %p77 = scmp.ne.s32.totalorder %s60, %s76
      %p78 = scmp.eq.s32.totalorder %s31, 0
      %p79 = por %p77, %p78
      %s80 = ssub.s32 %s32, %s51
      %s81 = ssub.s32 %s34, %s43
      %s82 = sor.u32 %s80, %s81
      %p83 = scmp.eq.s32.totalorder %s82, 0
      %s85 = sadd.s32 %s84, 1
      %s86 = scalar_select %p83, %s84, %s85
      %p89 = pneg %p83
      %p90 = scmp.eq.s32.totalorder %s25, 1
      %p91 = por %p89, %p90
      %p92 = scmp.ne.s32.totalorder %s84, %s87
      %p93 = scmp.eq.s32.totalorder %s25, 0
      %p94 = por %p92, %p93
      %p95 = scmp.ne.s32.totalorder %s84, %s87
      %p96 = scmp.eq.s32.totalorder %s30, 1
      %p97 = por %p95, %p96
      %p98 = scmp.ne.s32.totalorder %s87, %s88
      %p99 = scmp.eq.s32.totalorder %s30, 0
      %p100 = por %p98, %p99
      %p101 = scmp.ne.s32.totalorder %s87, %s88
      %p102 = scmp.eq.s32.totalorder %s31, 1
      %p103 = por %p101, %p102
      %p105 = scmp.ne.s32.totalorder %s88, %s104
      %p106 = scmp.eq.s32.totalorder %s31, 0
      %p107 = por %p105, %p106
      %s109 = sadd.s32 %s108, 1
      %p112 = scmp.eq.s32.totalorder %s25, 1
      %p113 = scmp.ne.s32.totalorder %s108, %s110
      %p114 = scmp.eq.s32.totalorder %s25, 0
      %p115 = por %p113, %p114
      %p116 = scmp.ne.s32.totalorder %s108, %s110
      %p117 = scmp.eq.s32.totalorder %s30, 1
      %p118 = por %p116, %p117
      %p119 = scmp.ne.s32.totalorder %s110, %s111
      %p120 = scmp.eq.s32.totalorder %s30, 0
      %p121 = por %p119, %p120
      %p122 = scmp.ne.s32.totalorder %s110, %s111
      %p123 = scmp.eq.s32.totalorder %s31, 1
      %p124 = por %p122, %p123
      %p126 = scmp.ne.s32.totalorder %s111, %s125
      %p127 = scmp.eq.s32.totalorder %s31, 0
      %p128 = por %p126, %p127
      %s130 = sadd.s32 %s129, 1
      %p133 = scmp.eq.s32.totalorder %s25, 1
      %p134 = scmp.ne.s32.totalorder %s129, %s131
      %p135 = scmp.eq.s32.totalorder %s25, 0
      %p136 = por %p134, %p135
      %p137 = scmp.ne.s32.totalorder %s129, %s131
      %p138 = scmp.eq.s32.totalorder %s30, 1
      %p139 = por %p137, %p138
      %p140 = scmp.ne.s32.totalorder %s131, %s132
      %p141 = scmp.eq.s32.totalorder %s30, 0
      %p142 = por %p140, %p141
      %p143 = scmp.ne.s32.totalorder %s131, %s132
      %p144 = scmp.eq.s32.totalorder %s31, 1
      %p145 = por %p143, %p144
      %p147 = scmp.ne.s32.totalorder %s132, %s146
      %p148 = scmp.eq.s32.totalorder %s31, 0
      %p149 = por %p147, %p148
      %s150 = ssub.s32 %s32, %s51
      %s151 = ssub.s32 %s33, %s47
      %s152 = sor.u32 %s150, %s151
      %p153 = scmp.eq.s32.totalorder %s152, 0
      %s155 = sadd.s32 %s154, 1
      %s156 = scalar_select %p153, %s154, %s155
      %p159 = pneg %p153
      %p160 = scmp.eq.s32.totalorder %s25, 1
      %p161 = por %p159, %p160
      %p162 = scmp.ne.s32.totalorder %s154, %s157
      %p163 = scmp.eq.s32.totalorder %s25, 0
      %p164 = por %p162, %p163
      %p165 = scmp.ne.s32.totalorder %s154, %s157
      %p166 = scmp.eq.s32.totalorder %s30, 1
      %p167 = por %p165, %p166
      %p168 = scmp.ne.s32.totalorder %s157, %s158
      %p169 = scmp.eq.s32.totalorder %s30, 0
      %p170 = por %p168, %p169
      %p171 = scmp.ne.s32.totalorder %s157, %s158
      %p172 = scmp.eq.s32.totalorder %s31, 1
      %p173 = por %p171, %p172
      %p175 = scmp.ne.s32.totalorder %s158, %s174
      %p176 = scmp.eq.s32.totalorder %s31, 0
      %p177 = por %p175, %p176
      %s178 = ssub.s32 %s32, %s51
      %s179 = ssub.s32 %s33, %s47
      %s180 = sor.u32 %s178, %s179
      %p181 = scmp.eq.s32.totalorder %s180, 0
      %s183 = sadd.s32 %s182, 1
      %s184 = scalar_select %p181, %s182, %s183
      %p187 = pneg %p181
      %p188 = scmp.eq.s32.totalorder %s25, 1
      %p189 = por %p187, %p188
      %p190 = scmp.ne.s32.totalorder %s182, %s185
      %p191 = scmp.eq.s32.totalorder %s25, 0
      %p192 = por %p190, %p191
      %p193 = scmp.ne.s32.totalorder %s182, %s185
      %p194 = scmp.eq.s32.totalorder %s30, 1
      %p195 = por %p193, %p194
      %p196 = scmp.ne.s32.totalorder %s185, %s186
      %p197 = scmp.eq.s32.totalorder %s30, 0
      %p198 = por %p196, %p197
      %p199 = scmp.ne.s32.totalorder %s185, %s186
      %p200 = scmp.eq.s32.totalorder %s31, 1
      %p201 = por %p199, %p200
      %p203 = scmp.ne.s32.totalorder %s186, %s202
      %p204 = scmp.eq.s32.totalorder %s31, 0
      %p205 = por %p203, %p204
      %p206 = scmp.le.s32.totalorder 1, %s25
      %p207 = scmp.lt.s32.totalorder %s25, 3
      %p208 = pnand %p206, %p207
      %p209 = pneg %p208
      // Predicated region
      $region9: #{tpu_custom_call.1} parent=5 // pred_check
        _
      $region10: #{tpu_custom_call.1} parent=5 // pred_check_branch
        %211 = sbr.rel (%p208) target = $region12
      $region11: #{tpu_custom_call.1} parent=5 // pred_region
        %s212 = ssub.s32 %s25, 1
        // Predicated region
        $region13: #{tpu_custom_call.1} parent=11 // pred_check
          %p213 = pneg %p121
        $region14: #{tpu_custom_call.1} parent=11 // pred_check_branch
          %215 = sbr.rel (%p213) target = $region16
        $region15: #{tpu_custom_call.1} parent=11 // pred_region
          %217 = vsyncadd [#allocation10], 0
          %s218 = sshll.u32 %s2, 4
          %s219 = int_to_ptr.hbm [resolvable:$true] %s218
          %s220 = sshll.u32 [#allocation11], 4
          %s221 = int_to_ptr.vmem [resolvable:$true] %s220
          %226 = dma.hbm_to_vmem [thread:$0]  %s219, 6144, %s221, [#allocation10], 384, 384, 24
        $region16: #{tpu_custom_call.1} parent=11 // pred_fallthru
          _
        // Predicated region
        $region17: #{tpu_custom_call.1} parent=11 // pred_check
          %p227 = pneg %p142
        $region18: #{tpu_custom_call.1} parent=11 // pred_check_branch
          %229 = sbr.rel (%p227) target = $region20
        $region19: #{tpu_custom_call.1} parent=11 // pred_region
          %231 = vsyncadd [#allocation13], 0
          %s233 = sshll.u32 %s3, 4
          %s234 = int_to_ptr.hbm [resolvable:$true] %s233
          %s235 = sshll.u32 [#allocation12], 4
          %s236 = int_to_ptr.vmem [resolvable:$true] %s235
          %238 = dma.hbm_to_vmem [thread:$0]  %s234, 48, %s236, [#allocation13]
        $region20: #{tpu_custom_call.1} parent=11 // pred_fallthru
          _
      $region12: #{tpu_custom_call.1} parent=5 // pred_fallthru
        _
      %p239 = scmp.lt.s32.totalorder %s25, 2
      // Predicated region
      $region21: #{tpu_custom_call.1} parent=5 // pred_check
        %p240 = pneg %p239
      $region22: #{tpu_custom_call.1} parent=5 // pred_check_branch
        %242 = sbr.rel (%p240) target = $region24
      $region23: #{tpu_custom_call.1} parent=5 // pred_region
        // Predicated region
        $region25: #{tpu_custom_call.1} parent=23 // pred_check
          %p243 = pneg %p66
        $region26: #{tpu_custom_call.1} parent=23 // pred_check_branch
          %245 = sbr.rel (%p243) target = $region28
        $region27: #{tpu_custom_call.1} parent=23 // pred_region
          %s246 = sand.u32 %s56, 1
          %s247 = scalar_lea.sflag [#allocation7], %s246
          %s248 = sand.u32 %s56, 1
          %s249 = smul.addr %s248, 8
          %s250 = scalar_lea.vmem [#allocation6], %s249
          %252 = vsyncadd %s247, 0
          %s253 = sadd.s32 %s33, %s32
          %s254 = smul.addr %s253, 8
          %s255 = scalar_lea.hbm %s0, %s254
          %s257 = sshll.u32 %s255, 4
          %s258 = int_to_ptr.hbm [resolvable:$true] %s257
          %s259 = sshll.u32 %s250, 4
          %s260 = int_to_ptr.vmem [resolvable:$true] %s259
          %262 = dma.hbm_to_vmem [thread:$0]  %s258, 128, %s260, %s247
        $region28: #{tpu_custom_call.1} parent=23 // pred_fallthru
          _
        // Predicated region
        $region29: #{tpu_custom_call.1} parent=23 // pred_check
          %p263 = pneg %p94
        $region30: #{tpu_custom_call.1} parent=23 // pred_check_branch
          %265 = sbr.rel (%p263) target = $region32
        $region31: #{tpu_custom_call.1} parent=23 // pred_region
          %s266 = sand.u32 %s25, 1
          %s267 = scalar_lea.sflag [#allocation10], %s266
          %s268 = sand.u32 %s84, 1
          %s269 = smul.addr %s268, 8
          %s270 = scalar_lea.vmem [#allocation9], %s269
          %272 = vsyncadd %s267, 0
          %s273 = sadd.s32 %s34, %s32
          %s274 = smul.addr %s273, 8
          %s275 = scalar_lea.hbm %s1, %s274
          %s277 = sshll.u32 %s275, 4
          %s278 = int_to_ptr.hbm [resolvable:$true] %s277
          %s279 = sshll.u32 %s270, 4
          %s280 = int_to_ptr.vmem [resolvable:$true] %s279
          %282 = dma.hbm_to_vmem [thread:$0]  %s278, 128, %s280, %s267
        $region32: #{tpu_custom_call.1} parent=23 // pred_fallthru
          _
      $region24: #{tpu_custom_call.1} parent=5 // pred_fallthru
        _
      %p283 = scmp.le.s32.totalorder 1, %s25
      %p284 = scmp.lt.s32.totalorder %s25, 3
      %p285 = pnand %p283, %p284
      %p286 = pneg %p285
      // Predicated region
      $region33: #{tpu_custom_call.1} parent=5 // pred_check
        _
      $region34: #{tpu_custom_call.1} parent=5 // pred_check_branch
        %288 = sbr.rel (%p285) target = $region36
      $region35: #{tpu_custom_call.1} parent=5 // pred_region
        %s289 = ssub.s32 %s25, 1
        %s290 = sand.u32 %s59, 1
        %s291 = scalar_lea.sflag [#allocation7], %s290
        %s292 = sand.u32 %s59, 1
        %s293 = smul.addr %s292, 8
        %s294 = scalar_lea.vmem [#allocation6], %s293
        // Predicated region
        $region37: #{tpu_custom_call.1} parent=35 // pred_check
          %p295 = pneg %p72
        $region38: #{tpu_custom_call.1} parent=35 // pred_check_branch
          %297 = sbr.rel (%p295) target = $region40
        $region39: #{tpu_custom_call.1} parent=35 // pred_region
          %299 = dma.done %s291, 128
        $region40: #{tpu_custom_call.1} parent=35 // pred_fallthru
          _
        %s300 = sand.u32 %s30, 1
        %s301 = scalar_lea.sflag [#allocation10], %s300
        %s302 = sand.u32 %s87, 1
        %s303 = smul.addr %s302, 8
        %s304 = scalar_lea.vmem [#allocation9], %s303
        // Predicated region
        $region41: #{tpu_custom_call.1} parent=35 // pred_check
          %p305 = pneg %p100
        $region42: #{tpu_custom_call.1} parent=35 // pred_check_branch
          %307 = sbr.rel (%p305) target = $region44
        $region43: #{tpu_custom_call.1} parent=35 // pred_region
          %309 = dma.done %s301, 128
        $region44: #{tpu_custom_call.1} parent=35 // pred_fallthru
          _
        // Predicated region
        $region45: #{tpu_custom_call.1} parent=35 // pred_check
          %p310 = pneg %p121
        $region46: #{tpu_custom_call.1} parent=35 // pred_check_branch
          %312 = sbr.rel (%p310) target = $region48
        $region47: #{tpu_custom_call.1} parent=35 // pred_region
          %314 = dma.done [#allocation10], 6144
        $region48: #{tpu_custom_call.1} parent=35 // pred_fallthru
          _
        // Predicated region
        $region49: #{tpu_custom_call.1} parent=35 // pred_check
          %p315 = pneg %p142
        $region50: #{tpu_custom_call.1} parent=35 // pred_check_branch
          %317 = sbr.rel (%p315) target = $region52
        $region51: #{tpu_custom_call.1} parent=35 // pred_region
          %319 = dma.done [#allocation13], 48
        $region52: #{tpu_custom_call.1} parent=35 // pred_fallthru
          _
        %s320 = sand.u32 %s59, 1
        %s321 = scalar_lea.sflag [#allocation7], %s320
        %s322 = sand.u32 %s59, 1
        %s323 = smul.addr %s322, 8
        %s324 = scalar_lea.vmem [#allocation6], %s323
        %p325 = pneg %p72
        %p326 = pneg %p69
        %s327 = sand.u32 %s30, 1
        %s328 = scalar_lea.sflag [#allocation10], %s327
        %s329 = sand.u32 %s87, 1
        %s330 = smul.addr %s329, 8
        %s331 = scalar_lea.vmem [#allocation9], %s330
        %p332 = pneg %p100
        %p333 = pneg %p97
        %p334 = pneg %p121
        %p335 = pneg %p118
        %p336 = pneg %p142
        %p337 = pneg %p139
        %p338 = pneg %p170
        %p339 = pneg %p167
        %s340 = sand.u32 %s157, 1
        %s341 = scalar_lea.sflag [#allocation8], %s340
        %s342 = sand.u32 %s157, 1
        %s343 = smul.addr %s342, 8
        %s344 = scalar_lea.vmem [#allocation14], %s343
        %p345 = pneg %p198
        %p346 = pneg %p195
        %s347 = sand.u32 %s185, 1
        %s348 = scalar_lea.sflag [#allocation16], %s347
        %s349 = sand.u32 %s185, 1
        %s350 = smul.addr %s349, 8
        %s351 = scalar_lea.vmem [#allocation15], %s350
        %p352 = scmp.eq.s32.totalorder %s37, 0
        // Predicated region
        $region53: #{tpu_custom_call.1} parent=35 // pred_check
          %p353 = pneg %p352
        $region54: #{tpu_custom_call.1} parent=35 // pred_check_branch
          %355 = sbr.rel (%p353) target = $region56
        $region55: #{tpu_custom_call.1} parent=35 // pred_region
          %v356 = vld [vmem:[%s294] sm:$0xff]
          %v357 = vld [vmem:[#allocation11] sm:$0xff]
          %v358 = vld [vmem:[#allocation11 + $0x18] sm:$0xff]
          %v359 = vld [vmem:[#allocation11 + $0x30] sm:$0xff]
          %v360 = vld [vmem:[#allocation11 + $0x48] sm:$0xff]
          %v361 = vld [vmem:[#allocation11 + $0x60] sm:$0xff]
          %v362 = vld [vmem:[#allocation11 + $0x78] sm:$0xff]
          %v363 = vld [vmem:[#allocation11 + $0x90] sm:$0xff]
          %v364 = vld [vmem:[#allocation11 + $0xa8] sm:$0xff]
          %v365 = vld [vmem:[#allocation11 + $0xc0] sm:$0xff]
          %v366 = vld [vmem:[#allocation11 + $0xd8] sm:$0xff]
          %v367 = vld [vmem:[#allocation11 + $0xf0] sm:$0xff]
          %v368 = vld [vmem:[#allocation11 + $0x108] sm:$0xff]
          %v369 = vld [vmem:[#allocation11 + $0x120] sm:$0xff]
          %v370 = vld [vmem:[#allocation11 + $0x138] sm:$0xff]
          %v371 = vld [vmem:[#allocation11 + $0x150] sm:$0xff]
          %v372 = vld [vmem:[#allocation11 + $0x168] sm:$0xff]
          %v373 = vld [vmem:[#allocation12] sm:$0x1]
          %v375 = vperm.slane %v373, 0
          %377 = vmatpush.msra.mxu0 %v372
          %378 = vmatpush.msra.mxu0 %v371
          %379 = vmatpush.msra.mxu0 %v370
          %380 = vmatpush.msra.mxu0 %v369
          %381 = vmatpush.msra.mxu0 %v368
          %382 = vmatpush.msra.mxu0 %v367
          %383 = vmatpush.msra.mxu0 %v366
          %384 = vmatpush.msra.mxu0 %v365
          %385 = vmatpush.msra.mxu0 %v364
          %386 = vmatpush.msra.mxu0 %v363
          %387 = vmatpush.msra.mxu0 %v362
          %388 = vmatpush.msra.mxu0 %v361
          %389 = vmatpush.msra.mxu0 %v360
          %390 = vmatpush.msra.mxu0 %v359
          %391 = vmatpush.msra.mxu0 %v358
          %392 = vmatpush.msra.mxu0 %v357
          %393 = vmatmul.f32.gmra.mxu0 %v356
          %v394 = vpop.f32.mrf.mxu0
          %v395 = vadd.f32 %v375, %v394
          %396 = vdwg.mxu0
          %397 = vst [vmem:[#allocation2] sm:$0xff] %v395
          %vm398 = vcmask 7168
          %399 = vst.msk [vmem:[#allocation3] sm:$0xff] %vm398, -inf
          %400 = vst.msk [vmem:[#allocation4] sm:$0xff] %vm398, 0.0
          %401 = vst [vmem:[#allocation5] sm:$0xff] 0.0
        $region56: #{tpu_custom_call.1} parent=35 // pred_fallthru
          _
        %v402 = vld [vmem:[%s304] sm:$0xff]
        %v403 = vld [vmem:[#allocation11 + $0x8] sm:$0xff]
        %v404 = vld [vmem:[#allocation11 + $0x20] sm:$0xff]
        %v405 = vld [vmem:[#allocation11 + $0x38] sm:$0xff]
        %v406 = vld [vmem:[#allocation11 + $0x50] sm:$0xff]
        %v407 = vld [vmem:[#allocation11 + $0x68] sm:$0xff]
        %v408 = vld [vmem:[#allocation11 + $0x80] sm:$0xff]
        %v409 = vld [vmem:[#allocation11 + $0x98] sm:$0xff]
        %v410 = vld [vmem:[#allocation11 + $0xb0] sm:$0xff]
        %v411 = vld [vmem:[#allocation11 + $0xc8] sm:$0xff]
        %v412 = vld [vmem:[#allocation11 + $0xe0] sm:$0xff]
        %v413 = vld [vmem:[#allocation11 + $0xf8] sm:$0xff]
        %v414 = vld [vmem:[#allocation11 + $0x110] sm:$0xff]
        %v415 = vld [vmem:[#allocation11 + $0x128] sm:$0xff]
        %v416 = vld [vmem:[#allocation11 + $0x140] sm:$0xff]
        %v417 = vld [vmem:[#allocation11 + $0x158] sm:$0xff]
        %v418 = vld [vmem:[#allocation11 + $0x170] sm:$0xff]
        %v419 = vld [vmem:[#allocation12 + $0x1] sm:$0x1]
        %v421 = vperm.slane %v419, 0
        %423 = vmatpush.msra.mxu0 %v418
        %424 = vmatpush.msra.mxu0 %v417
        %425 = vmatpush.msra.mxu0 %v416
        %426 = vmatpush.msra.mxu0 %v415
        %427 = vmatpush.msra.mxu0 %v414
        %428 = vmatpush.msra.mxu0 %v413
        %429 = vmatpush.msra.mxu0 %v412
        %430 = vmatpush.msra.mxu0 %v411
        %431 = vmatpush.msra.mxu0 %v410
        %432 = vmatpush.msra.mxu0 %v409
        %433 = vmatpush.msra.mxu0 %v408
        %434 = vmatpush.msra.mxu0 %v407
        %435 = vmatpush.msra.mxu0 %v406
        %436 = vmatpush.msra.mxu0 %v405
        %437 = vmatpush.msra.mxu0 %v404
        %438 = vmatpush.msra.mxu0 %v403
        %439 = vmatmul.f32.gmra.mxu0 %v402
        %v440 = vpop.f32.mrf.mxu0
        %v441 = vadd.f32 %v421, %v440
        %442 = vdwg.mxu0
        %v443 = vld [vmem:[#allocation11 + $0x10] sm:$0xff]
        %v444 = vld [vmem:[#allocation11 + $0x28] sm:$0xff]
        %v445 = vld [vmem:[#allocation11 + $0x40] sm:$0xff]
        %v446 = vld [vmem:[#allocation11 + $0x58] sm:$0xff]
        %v447 = vld [vmem:[#allocation11 + $0x70] sm:$0xff]
        %v448 = vld [vmem:[#allocation11 + $0x88] sm:$0xff]
        %v449 = vld [vmem:[#allocation11 + $0xa0] sm:$0xff]
        %v450 = vld [vmem:[#allocation11 + $0xb8] sm:$0xff]
        %v451 = vld [vmem:[#allocation11 + $0xd0] sm:$0xff]
        %v452 = vld [vmem:[#allocation11 + $0xe8] sm:$0xff]
        %v453 = vld [vmem:[#allocation11 + $0x100] sm:$0xff]
        %v454 = vld [vmem:[#allocation11 + $0x118] sm:$0xff]
        %v455 = vld [vmem:[#allocation11 + $0x130] sm:$0xff]
        %v456 = vld [vmem:[#allocation11 + $0x148] sm:$0xff]
        %v457 = vld [vmem:[#allocation11 + $0x160] sm:$0xff]
        %v458 = vld [vmem:[#allocation11 + $0x178] sm:$0xff]
        %v459 = vld [vmem:[#allocation12 + $0x2] sm:$0x1]
        %v461 = vperm.slane %v459, 0
        %463 = vmatpush.msra.mxu0 %v458
        %464 = vmatpush.msra.mxu0 %v457
        %465 = vmatpush.msra.mxu0 %v456
        %466 = vmatpush.msra.mxu0 %v455
        %467 = vmatpush.msra.mxu0 %v454
        %468 = vmatpush.msra.mxu0 %v453
        %469 = vmatpush.msra.mxu0 %v452
        %470 = vmatpush.msra.mxu0 %v451
        %471 = vmatpush.msra.mxu0 %v450
        %472 = vmatpush.msra.mxu0 %v449
        %473 = vmatpush.msra.mxu0 %v448
        %474 = vmatpush.msra.mxu0 %v447
        %475 = vmatpush.msra.mxu0 %v446
        %476 = vmatpush.msra.mxu0 %v445
        %477 = vmatpush.msra.mxu0 %v444
        %478 = vmatpush.msra.mxu0 %v443
        %479 = vmatmul.f32.gmra.mxu0 %v402
        %v480 = vpop.f32.mrf.mxu0
        %v481 = vadd.f32 %v461, %v480
        %482 = vdwg.mxu0
        %v483 = vld [vmem:[#allocation2] sm:$0xff]
        %484 = vmatpush.xpose.msra.mxu0 0.0
        %485 = vmatpush.xpose.msra.mxu0 0.0
        %486 = vmatpush.xpose.msra.mxu0 0.0
        %487 = vmatpush.xpose.msra.mxu0 0.0
        %488 = vmatpush.xpose.msra.mxu0 0.0
        %489 = vmatpush.xpose.msra.mxu0 0.0
        %490 = vmatpush.xpose.msra.mxu0 0.0
        %491 = vmatpush.xpose.msra.mxu0 0.0
        %492 = vmatpush.xpose.msra.mxu0 0.0
        %493 = vmatpush.xpose.msra.mxu0 0.0
        %494 = vmatpush.xpose.msra.mxu0 0.0
        %495 = vmatpush.xpose.msra.mxu0 0.0
        %496 = vmatpush.xpose.msra.mxu0 0.0
        %497 = vmatpush.xpose.msra.mxu0 0.0
        %498 = vmatpush.xpose.msra.mxu0 0.0
        %499 = vmatpush.xpose.msra.mxu0 %v441
        %500 = vmatmul.f32.gmra.mxu0 %v483
        %v501 = vpop.f32.mrf.mxu0
        %v502 = vadd.f32 0.0, %v501
        %503 = vdwg.mxu0
        %v504 = vld [vmem:[#allocation3] sm:$0xff]
        %vm505 = vcmask 64512
        %v506 = vsel %vm505, %v502, -inf
        %507 = vmax.xlane.f32.xlu0 %v506
        %v508 = vpop.xlane.xlu0 %507
        %v509 = vmax.f32 %v504, %v508
        %v510 = vsub.f32 %v504, %v509
        %v511 = vmul.f32 %v510, 1.442695
        %v512 = vpow.pop %v511
        %514 = vset.pattern.permute.xlu0 0
        %515 = vperm.xlu0 %514, %v509
        %v516 = vpop.permute.xlu0 %515
        %v518 = vsub.f32 %v502, %v516
        %v519 = vmul.f32 %v518, 1.442695
        %v520 = vpow.pop %v519
        %v521 = vld [vmem:[#allocation4] sm:$0xff]
        %v522 = vmul.f32 %v512, %v521
        %v523 = vsel %vm505, %v520, 0.0
        %524 = vadd.xlane.f32.xlu0 %v523
        %v525 = vpop.xlane.xlu0 %524
        %v526 = vadd.f32 %v522, %v525
        %vm527 = vcmask 7168
        %528 = vst.msk [vmem:[#allocation4] sm:$0xff] %vm527, %v526
        %v529 = vld [vmem:[#allocation5] sm:$0xff]
        %531 = vset.pattern.permute.xlu0 0
        %532 = vperm.xlu0 %531, %v512
        %v533 = vpop.permute.xlu0 %532
        %v535 = vmul.f32 %v533, %v529
        %v537 = vsel %vm505, %v520, 0
        %539 = vmatpush.msra.mxu0 0.0
        %540 = vmatpush.msra.mxu0 0.0
        %541 = vmatpush.msra.mxu0 0.0
        %542 = vmatpush.msra.mxu0 0.0
        %543 = vmatpush.msra.mxu0 0.0
        %544 = vmatpush.msra.mxu0 0.0
        %545 = vmatpush.msra.mxu0 0.0
        %546 = vmatpush.msra.mxu0 0.0
        %547 = vmatpush.msra.mxu0 0.0
        %548 = vmatpush.msra.mxu0 0.0
        %549 = vmatpush.msra.mxu0 0.0
        %550 = vmatpush.msra.mxu0 0.0
        %551 = vmatpush.msra.mxu0 0.0
        %552 = vmatpush.msra.mxu0 0.0
        %553 = vmatpush.msra.mxu0 0.0
        %554 = vmatpush.msra.mxu0 %v481
        %555 = vmatmul.f32.gmra.mxu0 %v537
        %v556 = vpop.f32.mrf.mxu0
        %v557 = vadd.f32 0.0, %v556
        %558 = vdwg.mxu0
        %v559 = vadd.f32 %v535, %v557
        %560 = vst [vmem:[#allocation5] sm:$0xff] %v559
        %561 = vst.msk [vmem:[#allocation3] sm:$0xff] %vm527, %v509
        // Predicated region
        $region57: #{tpu_custom_call.1} parent=35 // pred_check
          %p562 = pneg %p352
        $region58: #{tpu_custom_call.1} parent=35 // pred_check_branch
          %564 = sbr.rel (%p562) target = $region60
        $region59: #{tpu_custom_call.1} parent=35 // pred_region
          %v565 = vld [vmem:[#allocation4] sm:$0xff]
          %v566 = vrcp.pop %v565
          %v567 = vmul.f32 %v565, %v566
          %v568 = vsub.f32 1.0, %v567
          %v569 = vmul.f32 %v566, %v568
          %v570 = vadd.f32 %v566, %v569
          %vm571 = vweird.f32 %v565
          %vm572 = vweird.f32 %v566
          %vm573 = vmor %vm571, %vm572
          %v574 = vsel %vm573, %v566, %v570
          %v575 = vand.u32 2147483647, %v565
          %vm576 = vcmp.eq.f32.partialorder %v575, 8.507059e+37
          %v577 = vand.u32 %v565, 2147483648
          %v578 = vor.u32 1.1754944e-38, %v577
          %v579 = vsel %vm576, %v578, %v574
          %v580 = vld [vmem:[#allocation5] sm:$0xff]
          %v581 = vmul.f32 %v579, 0.17677669
          %583 = vset.pattern.permute.xlu0 0
          %584 = vperm.xlu0 %583, %v581
          %v585 = vpop.permute.xlu0 %584
          %v587 = vmul.f32 %v580, %v585
          %588 = vst [vmem:[%s344] sm:$0xff] %v587
          %v589 = vld [vmem:[%s294] sm:$0xff]
          %v590 = vadd.f32 %v587, %v589
          %591 = vst [vmem:[%s351] sm:$0xff] %v590
        $region60: #{tpu_custom_call.1} parent=35 // pred_fallthru
          _
        %s592 = sand.u32 %s157, 1
        %s593 = scalar_lea.sflag [#allocation8], %s592
        %s594 = sand.u32 %s157, 1
        %s595 = smul.addr %s594, 8
        %s596 = scalar_lea.vmem [#allocation14], %s595
        %s597 = sand.u32 %s185, 1
        %s598 = scalar_lea.sflag [#allocation16], %s597
        %s599 = sand.u32 %s185, 1
        %s600 = smul.addr %s599, 8
        %s601 = scalar_lea.vmem [#allocation15], %s600
        // Predicated region
        $region61: #{tpu_custom_call.1} parent=35 // pred_check
          %p602 = pneg %p167
        $region62: #{tpu_custom_call.1} parent=35 // pred_check_branch
          %604 = sbr.rel (%p602) target = $region64
        $region63: #{tpu_custom_call.1} parent=35 // pred_region
          %606 = vsyncadd %s593, 0
          %s607 = sadd.s32 %s36, %s35
          %s608 = smul.addr %s607, 8
          %s609 = scalar_lea.hbm %s4, %s608
          %s611 = sshll.u32 %s596, 4
          %s612 = int_to_ptr.vmem [resolvable:$true] %s611
          %s613 = sshll.u32 %s609, 4
          %s614 = int_to_ptr.hbm [resolvable:$true] %s613
          %616 = dma.vmem_to_hbm [thread:$0]  %s612, 128, %s614, %s593
        $region64: #{tpu_custom_call.1} parent=35 // pred_fallthru
          _
        // Predicated region
        $region65: #{tpu_custom_call.1} parent=35 // pred_check
          %p617 = pneg %p195
        $region66: #{tpu_custom_call.1} parent=35 // pred_check_branch
          %619 = sbr.rel (%p617) target = $region68
        $region67: #{tpu_custom_call.1} parent=35 // pred_region
          %621 = vsyncadd %s598, 0
          %s622 = sadd.s32 %s36, %s35
          %s623 = smul.addr %s622, 8
          %s624 = scalar_lea.hbm %s5, %s623
          %s626 = sshll.u32 %s601, 4
          %s627 = int_to_ptr.vmem [resolvable:$true] %s626
          %s628 = sshll.u32 %s624, 4
          %s629 = int_to_ptr.hbm [resolvable:$true] %s628
          %631 = dma.vmem_to_hbm [thread:$0]  %s627, 128, %s629, %s598
        $region68: #{tpu_custom_call.1} parent=35 // pred_fallthru
          _
      $region36: #{tpu_custom_call.1} parent=5 // pred_fallthru
        _
      %p632 = scmp.le.s32.totalorder 2, %s25
      // Predicated region
      $region69: #{tpu_custom_call.1} parent=5 // pred_check
        %p633 = pneg %p632
      $region70: #{tpu_custom_call.1} parent=5 // pred_check_branch
        %635 = sbr.rel (%p633) target = $region72
      $region71: #{tpu_custom_call.1} parent=5 // pred_region
        %s636 = ssub.s32 %s25, 2
        // Predicated region
        $region73: #{tpu_custom_call.1} parent=71 // pred_check
          %p637 = pneg %p173
        $region74: #{tpu_custom_call.1} parent=71 // pred_check_branch
          %639 = sbr.rel (%p637) target = $region76
        $region75: #{tpu_custom_call.1} parent=71 // pred_region
          %s640 = sand.u32 %s158, 1
          %s641 = scalar_lea.sflag [#allocation8], %s640
          %s642 = sand.u32 %s158, 1
          %s643 = smul.addr %s642, 8
          %s644 = scalar_lea.vmem [#allocation14], %s643
          %646 = dma.done %s641, 128
        $region76: #{tpu_custom_call.1} parent=71 // pred_fallthru
          _
        // Predicated region
        $region77: #{tpu_custom_call.1} parent=71 // pred_check
          %p647 = pneg %p201
        $region78: #{tpu_custom_call.1} parent=71 // pred_check_branch
          %649 = sbr.rel (%p647) target = $region80
        $region79: #{tpu_custom_call.1} parent=71 // pred_region
          %s650 = sand.u32 %s186, 1
          %s651 = scalar_lea.sflag [#allocation16], %s650
          %s652 = sand.u32 %s186, 1
          %s653 = smul.addr %s652, 8
          %s654 = scalar_lea.vmem [#allocation15], %s653
          %656 = dma.done %s651, 128
        $region80: #{tpu_custom_call.1} parent=71 // pred_fallthru
          _
      $region72: #{tpu_custom_call.1} parent=5 // pred_fallthru
        _
    $region6: #{tpu_custom_call.1} parent=1 // loop_footer
      %s29 = sadd.s32 1, %s25
    $region7: #{tpu_custom_call.1} parent=1 // loop_footer_branch
      %24 = sbr.rel target = $region3
    $region8: #{tpu_custom_call.1} parent=1 // loop_exit
      _
    %657 = vsyncpa [#allocation7], 1
    %s658 = scalar_lea.sflag [#allocation7], 1
    %659 = vsyncpa %s658, 1
    %660 = vsyncpa [#allocation10], 1
    %s661 = scalar_lea.sflag [#allocation10], 1
    %662 = vsyncpa %s661, 1
    %663 = vsyncpa [#allocation13], 1
    %664 = vsyncpa [#allocation8], 1
    %s665 = scalar_lea.sflag [#allocation8], 1
    %666 = vsyncpa %s665, 1
    %667 = vsyncpa [#allocation16], 1
    %s668 = scalar_lea.sflag [#allocation16], 1
    %669 = vsyncpa %s668, 1

</llo_original>
